<compile_context>
chip_gen: v5e
topology: v5e:2x2
jax: 0.10.0
libtpu: 0.0.40
codegen_flags: <defaults>
</compile_context>

<pallas_src>
import math

import jax
import jax.numpy as jnp
from jax.experimental import pallas as pl
from jax.experimental.pallas import tpu as pltpu


def _round_up(x, m):
    return ((x + m - 1) // m) * m


# ------------------------- Pallas kernel -------------------------

def _cnn_taps_kernel(x_ref, w_ref, b_ref, o_ref):
    """One grid step == one (batch, L-tile) halo tile.

    x_ref: (1, TL + kmax - 1, din)  f32   input halo tile
    w_ref: (kmax, din, Npad)        f32   fused per-tap weights (all filters)
    b_ref: (1, Npad)                f32   fused bias
    o_ref: (1, TL, Npad)            f32   relu(conv) output tile
    """
    _, tl, npad = o_ref.shape
    kmax = w_ref.shape[0]

    acc = jnp.zeros((tl, npad), jnp.float32)
    # Static unroll over taps: each tap is a static-offset slice of the
    # resident halo tile and one MXU matmul accumulated in f32.
    for j in range(kmax):
        xj = x_ref[0, j:j + tl, :]                        # (TL, din)
        acc = acc + jnp.dot(xj, w_ref[j],
                            preferred_element_type=jnp.float32)
    acc = acc + b_ref[...]                                # (1, Npad) broadcasts
    o_ref[0, :, :] = jnp.maximum(acc, 0.0).astype(o_ref.dtype)


def _fused_conv_relu(x_tiles, w_taps, b_pad, tl):
    """relu(per-tap conv matmul + bias) over halo tiles, one pallas_call."""
    g, tl_h, din = x_tiles.shape
    kmax, _, npad = w_taps.shape

    # Explicit VMEM budget (v7x has only 64 MiB physical VMEM): double-buffered
    # x / out blocks + weights + bias + f32 accumulator, generous headroom.
    est = (2 * tl_h * din * 4            # x halo tile (double buffered)
           + 2 * kmax * din * npad * 4   # fused weights
           + 2 * npad * 4                # bias
           + 2 * tl * npad * 4           # output tile (double buffered)
           + tl * npad * 4)              # accumulator
    vmem_limit = int(min(max(4 * est, 16 << 20), 64 << 20))

    return pl.pallas_call(
        _cnn_taps_kernel,
        out_shape=jax.ShapeDtypeStruct((g, tl, npad), jnp.float32),
        grid_spec=pltpu.PrefetchScalarGridSpec(
            num_scalar_prefetch=0,
            grid=(g,),
            in_specs=[
                pl.BlockSpec((1, tl_h, din), lambda i: (i, 0, 0)),     # halo tile
                pl.BlockSpec((kmax, din, npad), lambda i: (0, 0, 0)),  # weights (resident)
                pl.BlockSpec((1, npad), lambda i: (0, 0)),             # bias (resident)
            ],
            out_specs=pl.BlockSpec((1, tl, npad), lambda i: (i, 0, 0)),
        ),
        compiler_params=pltpu.CompilerParams(
            dimension_semantics=("parallel",),
            vmem_limit_bytes=vmem_limit,
        ),
    )(x_tiles, w_taps, b_pad)


# ------------------------- CNNEncoder wrapper -------------------------

class CNNEncoderPallas:
    def __init__(self, filters_num, filters, din, key, *, tile_l=256):
        self.filters_num = filters_num
        self.filters = tuple(filters)
        self.din = din
        self.tile_l = tile_l
        # all filter widths must be odd so every conv keeps length L (matches
        # the torch.cat requirement in the reference module).
        assert all(k % 2 == 1 for k in self.filters)

        # deterministic xavier_uniform_ init for each Conv2d(1, fn, (k, din)),
        # bias = 0  (matches init_model_weight()).
        self.weights = []   # each: (filters_num, 1, k, din)
        self.biases = []    # each: (filters_num,)
        for k in self.filters:
            key, sub = jax.random.split(key)
            fan_in = 1 * k * din
            fan_out = filters_num * k * din
            a = math.sqrt(6.0 / (fan_in + fan_out))
            w = jax.random.uniform(sub, (filters_num, 1, k, din),
                                   minval=-a, maxval=a, dtype=jnp.float32)
            self.weights.append(w)
            self.biases.append(jnp.zeros((filters_num,), jnp.float32))

        # Pack all convs into one per-tap weight tensor (kmax, din, Npad) with
        # the output feature dim zero-padded to a 128-lane multiple so the
        # kernel's output stores are lane-dense.
        self.kmax = max(self.filters)
        self.f_total = filters_num * len(self.filters)
        self.npad = _round_up(self.f_total, 128)
        pmax = self.kmax // 2

        w_taps = jnp.zeros((self.kmax, din, self.npad), jnp.float32)
        col = 0
        for k, w in zip(self.filters, self.weights):
            off = pmax - k // 2
            for t in range(k):
                w_taps = w_taps.at[off + t, :, col:col + filters_num].set(
                    w[:, 0, t, :].T)
            col += filters_num
        self.w_taps = w_taps                                   # (kmax, din, Npad)

        b_pad = jnp.zeros((1, self.npad), jnp.float32)
        self.b_pad = b_pad.at[0, :self.f_total].set(
            jnp.concatenate(self.biases, axis=0))              # (1, Npad)

    def _mask(self, inputs, lengths):
        if lengths is None:
            return inputs
        B, L, _ = inputs.shape
        seq_range = jnp.arange(L)[None, :]                     # (1, L)
        mask = (seq_range < lengths[:, None]).astype(inputs.dtype)
        return inputs * mask[:, :, None]

    def __call__(self, inputs, lengths=None, tile_l=None):
        # inputs: (B, L, din) float32
        B, L, din = inputs.shape
        assert din == self.din
        x = self._mask(inputs, lengths)

        kmax = self.kmax
        pmax = kmax // 2
        tl = tile_l if tile_l is not None else self.tile_l
        tl = _round_up(min(tl, _round_up(L, 8)), 8)            # 8 <= tl, mult of 8
        n_tiles = -(-L // tl)                                  # cdiv
        l_t = n_tiles * tl
        tl_h = tl + kmax - 1

        # Pad L: kmax//2 halo on the left, halo + L-rounding on the right.
        x_pad = jnp.pad(x, ((0, 0), (pmax, pmax + (l_t - L)), (0, 0)))

        # Overlapping halo tiles (B, n_tiles, tl_h, din) -> (B*n_tiles, tl_h, din).
        # ~1x input bytes (plus kmax-1 halo rows per tile), NOT kmax x im2col.
        tiles = [x_pad[:, i * tl:i * tl + tl_h, :] for i in range(n_tiles)]
        x_tiles = jnp.stack(tiles, axis=1).reshape(B * n_tiles, tl_h, din)

        y = _fused_conv_relu(x_tiles, self.w_taps, self.b_pad, tl)
        y = y.reshape(B, l_t, self.npad)[:, :L, :self.f_total]
        return y                                               # (B, L, fn*len(filters))


# ------------------------- reference (plain JAX) -------------------------

def _reference_forward(enc, inputs, lengths):
    x = enc._mask(inputs, lengths)                             # (B, L, din)
    x4 = x[:, None, :, :]                                      # NCHW: (B,1,L,din)
    outs = []
    for k, w, b in zip(enc.filters, enc.weights, enc.biases):
        y = jax.lax.conv_general_dilated(
            x4, w, window_strides=(1, 1),
            padding=((k // 2, k // 2), (0, 0)),
            dimension_numbers=("NCHW", "OIHW", "NCHW"))        # (B, fn, L, 1)
        y = jnp.maximum(y + b[None, :, None, None], 0.0)
        outs.append(jnp.transpose(y[:, :, :, 0], (0, 2, 1)))   # (B, L, fn)
    return jnp.concatenate(outs, axis=2)


# ------------------------- main -------------------------

if __name__ == "__main__":
    key = jax.random.PRNGKey(0)
    k_init, k_x = jax.random.split(key)

    B, L, din = 2, 16, 32
    filters = (1, 3, 5)
    filters_num = 8

    enc = CNNEncoderPallas(filters_num, filters, din, k_init)

    x = jax.random.normal(k_x, (B, L, din), dtype=jnp.float32)
    lengths = jnp.array([16, 11], dtype=jnp.int32)

    out = jax.block_until_ready(enc(x, lengths))
    ref = _reference_forward(enc, x, lengths)
    assert out.shape == (B, L, filters_num * len(filters))
    assert jnp.allclose(out, ref, atol=1e-4, rtol=1e-4)

    # Also exercise the multi-tile halo path (2 L-tiles per sequence).
    out_tiled = jax.block_until_ready(enc(x, lengths, tile_l=8))
    assert jnp.allclose(out_tiled, ref, atol=1e-4, rtol=1e-4)

    print("KERNEL_OK")
</pallas_src>

<mosaic_0001>
module attributes {stable_mosaic.version = 11 : i64} {
  func.func @_cnn_taps_kernel(%arg0: i32, %arg1: memref<1x20x32xf32, #tpu.memory_space<vmem>>, %arg2: memref<5x32x128xf32, #tpu.memory_space<vmem>>, %arg3: memref<1x128xf32, #tpu.memory_space<vmem>>, %arg4: memref<1x16x128xf32, #tpu.memory_space<vmem>>) attributes {dimension_semantics = [#tpu.dimension_semantics<parallel>], iteration_bounds = array<i64: 2>, scalar_prefetch = 0 : i64, scratch_operands = 0 : i64, tpu.core_type = #tpu.core_type<tc>, window_params = [{transform_indices = @transform_0, window_bounds = array<i64: 1, 20, 32>}, {pipeline_mode = #tpu.pipeline_mode<synchronous>, transform_indices = @transform_1, window_bounds = array<i64: 5, 32, 128>}, {pipeline_mode = #tpu.pipeline_mode<synchronous>, transform_indices = @transform_2, window_bounds = array<i64: 1, 128>}, {transform_indices = @transform_3, window_bounds = array<i64: 1, 16, 128>}]} {
    %cst = arith.constant 0.000000e+00 : f32
    %0 = vector.broadcast %cst : f32 to vector<16x128xf32>
    %c0 = arith.constant 0 : index
    %c0_0 = arith.constant 0 : index
    %c0_1 = arith.constant 0 : index
    %1 = vector.load %arg1[%c0, %c0_0, %c0_1] : memref<1x20x32xf32, #tpu.memory_space<vmem>>, vector<1x16x32xf32>
    %2 = vector.shape_cast %1 : vector<1x16x32xf32> to vector<16x32xf32>
    %c0_2 = arith.constant 0 : index
    %c0_3 = arith.constant 0 : index
    %c0_4 = arith.constant 0 : index
    %3 = vector.load %arg2[%c0_2, %c0_3, %c0_4] : memref<5x32x128xf32, #tpu.memory_space<vmem>>, vector<1x32x128xf32>
    %4 = vector.shape_cast %3 : vector<1x32x128xf32> to vector<32x128xf32>
    %cst_5 = arith.constant dense<0.000000e+00> : vector<16x128xf32>
    %5 = tpu.matmul %2, %4, %cst_5 {dimension_numbers = #tpu.dot_dimension_numbers<[1], [0], [0], [1], [0, 0, 1, 1], [], []>} : vector<16x32xf32>, vector<32x128xf32>, vector<16x128xf32> -> vector<16x128xf32>
    %6 = arith.addf %0, %5 : vector<16x128xf32>
    %c0_6 = arith.constant 0 : index
    %c1 = arith.constant 1 : index
    %c0_7 = arith.constant 0 : index
    %7 = vector.load %arg1[%c0_6, %c1, %c0_7] : memref<1x20x32xf32, #tpu.memory_space<vmem>>, vector<1x16x32xf32>
    %8 = vector.shape_cast %7 : vector<1x16x32xf32> to vector<16x32xf32>
    %c1_8 = arith.constant 1 : index
    %c0_9 = arith.constant 0 : index
    %c0_10 = arith.constant 0 : index
    %9 = vector.load %arg2[%c1_8, %c0_9, %c0_10] : memref<5x32x128xf32, #tpu.memory_space<vmem>>, vector<1x32x128xf32>
    %10 = vector.shape_cast %9 : vector<1x32x128xf32> to vector<32x128xf32>
    %cst_11 = arith.constant dense<0.000000e+00> : vector<16x128xf32>
    %11 = tpu.matmul %8, %10, %cst_11 {dimension_numbers = #tpu.dot_dimension_numbers<[1], [0], [0], [1], [0, 0, 1, 1], [], []>} : vector<16x32xf32>, vector<32x128xf32>, vector<16x128xf32> -> vector<16x128xf32>
    %12 = arith.addf %6, %11 : vector<16x128xf32>
    %c0_12 = arith.constant 0 : index
    %c2 = arith.constant 2 : index
    %c0_13 = arith.constant 0 : index
    %13 = vector.load %arg1[%c0_12, %c2, %c0_13] : memref<1x20x32xf32, #tpu.memory_space<vmem>>, vector<1x16x32xf32>
    %14 = vector.shape_cast %13 : vector<1x16x32xf32> to vector<16x32xf32>
    %c2_14 = arith.constant 2 : index
    %c0_15 = arith.constant 0 : index
    %c0_16 = arith.constant 0 : index
    %15 = vector.load %arg2[%c2_14, %c0_15, %c0_16] : memref<5x32x128xf32, #tpu.memory_space<vmem>>, vector<1x32x128xf32>
    %16 = vector.shape_cast %15 : vector<1x32x128xf32> to vector<32x128xf32>
    %cst_17 = arith.constant dense<0.000000e+00> : vector<16x128xf32>
    %17 = tpu.matmul %14, %16, %cst_17 {dimension_numbers = #tpu.dot_dimension_numbers<[1], [0], [0], [1], [0, 0, 1, 1], [], []>} : vector<16x32xf32>, vector<32x128xf32>, vector<16x128xf32> -> vector<16x128xf32>
    %18 = arith.addf %12, %17 : vector<16x128xf32>
    %c0_18 = arith.constant 0 : index
    %c3 = arith.constant 3 : index
    %c0_19 = arith.constant 0 : index
    %19 = vector.load %arg1[%c0_18, %c3, %c0_19] : memref<1x20x32xf32, #tpu.memory_space<vmem>>, vector<1x16x32xf32>
    %20 = vector.shape_cast %19 : vector<1x16x32xf32> to vector<16x32xf32>
    %c3_20 = arith.constant 3 : index
    %c0_21 = arith.constant 0 : index
    %c0_22 = arith.constant 0 : index
    %21 = vector.load %arg2[%c3_20, %c0_21, %c0_22] : memref<5x32x128xf32, #tpu.memory_space<vmem>>, vector<1x32x128xf32>
    %22 = vector.shape_cast %21 : vector<1x32x128xf32> to vector<32x128xf32>
    %cst_23 = arith.constant dense<0.000000e+00> : vector<16x128xf32>
    %23 = tpu.matmul %20, %22, %cst_23 {dimension_numbers = #tpu.dot_dimension_numbers<[1], [0], [0], [1], [0, 0, 1, 1], [], []>} : vector<16x32xf32>, vector<32x128xf32>, vector<16x128xf32> -> vector<16x128xf32>
    %24 = arith.addf %18, %23 : vector<16x128xf32>
    %c0_24 = arith.constant 0 : index
    %c4 = arith.constant 4 : index
    %c0_25 = arith.constant 0 : index
    %25 = vector.load %arg1[%c0_24, %c4, %c0_25] : memref<1x20x32xf32, #tpu.memory_space<vmem>>, vector<1x16x32xf32>
    %26 = vector.shape_cast %25 : vector<1x16x32xf32> to vector<16x32xf32>
    %c4_26 = arith.constant 4 : index
    %c0_27 = arith.constant 0 : index
    %c0_28 = arith.constant 0 : index
    %27 = vector.load %arg2[%c4_26, %c0_27, %c0_28] : memref<5x32x128xf32, #tpu.memory_space<vmem>>, vector<1x32x128xf32>
    %28 = vector.shape_cast %27 : vector<1x32x128xf32> to vector<32x128xf32>
    %cst_29 = arith.constant dense<0.000000e+00> : vector<16x128xf32>
    %29 = tpu.matmul %26, %28, %cst_29 {dimension_numbers = #tpu.dot_dimension_numbers<[1], [0], [0], [1], [0, 0, 1, 1], [], []>} : vector<16x32xf32>, vector<32x128xf32>, vector<16x128xf32> -> vector<16x128xf32>
    %30 = arith.addf %24, %29 : vector<16x128xf32>
    %c0_30 = arith.constant 0 : index
    %c0_31 = arith.constant 0 : index
    %31 = vector.load %arg3[%c0_30, %c0_31] : memref<1x128xf32, #tpu.memory_space<vmem>>, vector<1x128xf32>
    %32 = vector.broadcast %31 : vector<1x128xf32> to vector<16x128xf32>
    %33 = arith.addf %30, %32 : vector<16x128xf32>
    %cst_32 = arith.constant 0.000000e+00 : f32
    %34 = vector.broadcast %cst_32 : f32 to vector<16x128xf32>
    %35 = arith.maximumf %33, %34 : vector<16x128xf32>
    %c0_33 = arith.constant 0 : index
    %c0_34 = arith.constant 0 : index
    %c0_35 = arith.constant 0 : index
    %36 = vector.load %arg4[%c0_33, %c0_34, %c0_35] : memref<1x16x128xf32, #tpu.memory_space<vmem>>, vector<1x16x128xf32>
    %37 = vector.shape_cast %36 : vector<1x16x128xf32> to vector<16x128xf32>
    %38 = vector.shape_cast %35 : vector<16x128xf32> to vector<1x16x128xf32>
    tpu.vector_store %arg4[%c0_33, %c0_34, %c0_35], %38 {strides = array<i32>} : memref<1x16x128xf32, #tpu.memory_space<vmem>>, vector<1x16x128xf32>,
    return
  }
  func.func @transform_0(%arg0: i32) -> (i32, i32, i32) {
    %c0_i32 = arith.constant 0 : i32
    %c0_i32_0 = arith.constant 0 : i32
    %c0_i32_1 = arith.constant 0 : i32
    return %arg0, %c0_i32, %c0_i32_0 : i32, i32, i32
  }
  func.func @transform_1(%arg0: i32) -> (i32, i32, i32) {
    %c0_i32 = arith.constant 0 : i32
    %c0_i32_0 = arith.constant 0 : i32
    %c0_i32_1 = arith.constant 0 : i32
    %c0_i32_2 = arith.constant 0 : i32
    return %c0_i32, %c0_i32_0, %c0_i32_1 : i32, i32, i32
  }
  func.func @transform_2(%arg0: i32) -> (i32, i32) {
    %c0_i32 = arith.constant 0 : i32
    %c0_i32_0 = arith.constant 0 : i32
    %c0_i32_1 = arith.constant 0 : i32
    return %c0_i32, %c0_i32_0 : i32, i32
  }
  func.func @transform_3(%arg0: i32) -> (i32, i32, i32) {
    %c0_i32 = arith.constant 0 : i32
    %c0_i32_0 = arith.constant 0 : i32
    %c0_i32_1 = arith.constant 0 : i32
    return %arg0, %c0_i32, %c0_i32_0 : i32, i32, i32
  }
}

</mosaic_0001>

<llo_original>
// kernel: tpu_custom_call.1
$region0: #{tpu_custom_call.1}
  #allocation0 [shape = 'u32[]', space=smem, size = 0x4, offset = 0x4, fixed_abs, tag = 'smem constant byte address 0x4 - core index']
  #allocation1 [shape = 'u32[72,128]{1,0:T(1,128)}', space=vmem, size = 0x9000, scoped, tag = 'internal scratch']
  %s0 = inlined_call_operand.vmem [shape: f32[2,20,32], index: 0, kind: input, shape index: {}]
  %s1 = inlined_call_operand.hbm [shape: f32[5,32,128], index: 1, kind: input, shape index: {}]
  %s2 = inlined_call_operand.vmem [shape: f32[1,128], index: 2, kind: input, shape index: {}]
  %s3 = inlined_call_operand.hbm [shape: f32[2,16,128], index: 3, kind: output, shape index: {}]
  %s4 = sld [smem:[#allocation0]]
  $region49: #{tpu_custom_call.1} parent=0
    _
  %s6 = ssub.s32 1, %s4
  %s7 = scalar_select 0, %s6, %s4
  $region1: #{tpu_custom_call.1} parent=0
    #allocation2 [shape = 'u8[81920]{0}', space=vmem, size = 0x14000, scoped, tag = 'input window, operand 1, single buffered']
    #allocation3 [shape = 's32[2]{0}', space=sflag, size = 0x8, scoped, tag = 'scoped memory for tpu_custom_call.1']
    #allocation4 [shape = 's32[2]{0}', space=sflag, size = 0x8, scoped, tag = 'scoped memory for tpu_custom_call.1']
    #allocation5 [shape = 'u8[16384]{0}', space=vmem, size = 0x4000, scoped, tag = 'output window, operand 0']
    %8 = vsyncpa [#allocation3], 0
    %9 = vsyncpa [#allocation4], 0
    %s10 = scalar_lea.sflag [#allocation4], 1
    %11 = vsyncpa %s10, 0
    loop: start=0, step=1, limit=4
    $region2: #{tpu_custom_call.1} parent=1 // loop_pre_header
      _
    $region3: #{tpu_custom_call.1} parent=1 // loop_header
      %s13 = sphi 0, %s17
      %p14 = scmp.ge.s32.totalorder %s13, 4
      %s23 = sphi 0, %s25
      %s26 = sphi 0, %s23
      %s27 = sphi 0, %s26
      %s43 = sphi 0, %s27
      %s47 = sphi 0, %s47
      %s49 = sphi 0, %s47
      %s50 = sphi 0, %s49
      %s64 = sphi 0, %s50
      %s68 = sphi 0, %s68
      %s70 = sphi 0, %s68
      %s71 = sphi 0, %s70
      %s85 = sphi 0, %s71
      %s91 = sphi 0, %s93
      %s94 = sphi 0, %s91
      %s95 = sphi 0, %s94
      %s111 = sphi 0, %s95
    $region4: #{tpu_custom_call.1} parent=1 // loop_header_branch
      %16 = sbr.rel (%p14) target = $region8
    $region5: #{tpu_custom_call.1} parent=1 // loop_body
      %s18 = ssub.s32 %s13, 1
      %s19 = ssub.s32 %s13, 2
      %s20 = sadd.s32 %s13, 1
      %s21 = ssub.s32 %s13, %s20
      %p22 = scmp.eq.s32.totalorder %s21, 0
      %s24 = sadd.s32 %s23, 1
      %s25 = scalar_select %p22, %s23, %s24
      %p28 = pneg %p22
      %p29 = scmp.eq.s32.totalorder %s13, 1
      %p30 = por %p28, %p29
      %p31 = scmp.ne.s32.totalorder %s23, %s26
      %p32 = scmp.eq.s32.totalorder %s13, 0
      %p33 = por %p31, %p32
      %p34 = scmp.ne.s32.totalorder %s23, %s26
      %p35 = scmp.eq.s32.totalorder %s18, 1
      %p36 = por %p34, %p35
      %p37 = scmp.ne.s32.totalorder %s26, %s27
      %p38 = scmp.eq.s32.totalorder %s18, 0
      %p39 = por %p37, %p38
      %p40 = scmp.ne.s32.totalorder %s26, %s27
      %p41 = scmp.eq.s32.totalorder %s19, 1
      %p42 = por %p40, %p41
      %p44 = scmp.ne.s32.totalorder %s27, %s43
      %p45 = scmp.eq.s32.totalorder %s19, 0
      %p46 = por %p44, %p45
      %s48 = sadd.s32 %s47, 1
      %p51 = scmp.eq.s32.totalorder %s13, 1
      %p52 = scmp.ne.s32.totalorder %s47, %s49
      %p53 = scmp.eq.s32.totalorder %s13, 0
      %p54 = por %p52, %p53
      %p55 = scmp.ne.s32.totalorder %s47, %s49
      %p56 = scmp.eq.s32.totalorder %s18, 1
      %p57 = por %p55, %p56
      %p58 = scmp.ne.s32.totalorder %s49, %s50
      %p59 = scmp.eq.s32.totalorder %s18, 0
      %p60 = por %p58, %p59
      %p61 = scmp.ne.s32.totalorder %s49, %s50
      %p62 = scmp.eq.s32.totalorder %s19, 1
      %p63 = por %p61, %p62
      %p65 = scmp.ne.s32.totalorder %s50, %s64
      %p66 = scmp.eq.s32.totalorder %s19, 0
      %p67 = por %p65, %p66
      %s69 = sadd.s32 %s68, 1
      %p72 = scmp.eq.s32.totalorder %s13, 1
      %p73 = scmp.ne.s32.totalorder %s68, %s70
      %p74 = scmp.eq.s32.totalorder %s13, 0
      %p75 = por %p73, %p74
      %p76 = scmp.ne.s32.totalorder %s68, %s70
      %p77 = scmp.eq.s32.totalorder %s18, 1
      %p78 = por %p76, %p77
      %p79 = scmp.ne.s32.totalorder %s70, %s71
      %p80 = scmp.eq.s32.totalorder %s18, 0
      %p81 = por %p79, %p80
      %p82 = scmp.ne.s32.totalorder %s70, %s71
      %p83 = scmp.eq.s32.totalorder %s19, 1
      %p84 = por %p82, %p83
      %p86 = scmp.ne.s32.totalorder %s71, %s85
      %p87 = scmp.eq.s32.totalorder %s19, 0
      %p88 = por %p86, %p87
      %s89 = ssub.s32 %s13, %s20
      %p90 = scmp.eq.s32.totalorder %s89, 0
      %s92 = sadd.s32 %s91, 1
      %s93 = scalar_select %p90, %s91, %s92
      %p96 = pneg %p90
      %p97 = scmp.eq.s32.totalorder %s13, 1
      %p98 = por %p96, %p97
      %p99 = scmp.ne.s32.totalorder %s91, %s94
      %p100 = scmp.eq.s32.totalorder %s13, 0
      %p101 = por %p99, %p100
      %p102 = scmp.ne.s32.totalorder %s91, %s94
      %p103 = scmp.eq.s32.totalorder %s18, 1
      %p104 = por %p102, %p103
      %p105 = scmp.ne.s32.totalorder %s94, %s95
      %p106 = scmp.eq.s32.totalorder %s18, 0
      %p107 = por %p105, %p106
      %p108 = scmp.ne.s32.totalorder %s94, %s95
      %p109 = scmp.eq.s32.totalorder %s19, 1
      %p110 = por %p108, %p109
      %p112 = scmp.ne.s32.totalorder %s95, %s111
      %p113 = scmp.eq.s32.totalorder %s19, 0
      %p114 = por %p112, %p113
      %p115 = scmp.le.s32.totalorder 1, %s13
      %p116 = scmp.lt.s32.totalorder %s13, 3
      %p117 = pnand %p115, %p116
      %p118 = pneg %p117
      // Predicated region
      $region9: #{tpu_custom_call.1} parent=5 // pred_check
        _
      $region10: #{tpu_custom_call.1} parent=5 // pred_check_branch
        %120 = sbr.rel (%p117) target = $region12
      $region11: #{tpu_custom_call.1} parent=5 // pred_region
        %s121 = ssub.s32 %s13, 1
        // Predicated region
        $region13: #{tpu_custom_call.1} parent=11 // pred_check
          %p122 = pneg %p60
        $region14: #{tpu_custom_call.1} parent=11 // pred_check_branch
          %124 = sbr.rel (%p122) target = $region16
        $region15: #{tpu_custom_call.1} parent=11 // pred_region
          %126 = vsyncadd [#allocation3], 0
          %s127 = sshll.u32 %s1, 4
          %s128 = int_to_ptr.hbm [resolvable:$true] %s127
          %s129 = sshll.u32 [#allocation2], 4
          %s130 = int_to_ptr.vmem [resolvable:$true] %s129
          %135 = dma.hbm_to_vmem [thread:$0]  %s128, 2560, %s130, [#allocation3], 128, 128, 8
        $region16: #{tpu_custom_call.1} parent=11 // pred_fallthru
          _
        // Predicated region
        $region17: #{tpu_custom_call.1} parent=11 // pred_check
          %p136 = pneg %p81
        $region18: #{tpu_custom_call.1} parent=11 // pred_check_branch
          %138 = sbr.rel (%p136) target = $region20
        $region19: #{tpu_custom_call.1} parent=11 // pred_region
          _
        $region20: #{tpu_custom_call.1} parent=11 // pred_fallthru
          _
      $region12: #{tpu_custom_call.1} parent=5 // pred_fallthru
        _
      %p139 = scmp.lt.s32.totalorder %s13, 2
      // Predicated region
      $region21: #{tpu_custom_call.1} parent=5 // pred_check
        %p140 = pneg %p139
      $region22: #{tpu_custom_call.1} parent=5 // pred_check_branch
        %142 = sbr.rel (%p140) target = $region24
      $region23: #{tpu_custom_call.1} parent=5 // pred_region
        // Predicated region
        $region25: #{tpu_custom_call.1} parent=23 // pred_check
          %p143 = pneg %p33
        $region26: #{tpu_custom_call.1} parent=23 // pred_check_branch
          %145 = sbr.rel (%p143) target = $region28
        $region27: #{tpu_custom_call.1} parent=23 // pred_region
          %p146 = scmp.lt.s32.totalorder %s13, 1
          %s147 = scalar_select %p146, %s13, 1
          %s148 = smul.addr %s147, 3
          %s149 = smul.addr %s148, 8
          %s150 = scalar_lea.vmem %s0, %s149
        $region28: #{tpu_custom_call.1} parent=23 // pred_fallthru
          _
      $region24: #{tpu_custom_call.1} parent=5 // pred_fallthru
        _
      %p151 = scmp.le.s32.totalorder 1, %s13
      %p152 = scmp.lt.s32.totalorder %s13, 3
      %p153 = pnand %p151, %p152
      %p154 = pneg %p153
      // Predicated region
      $region29: #{tpu_custom_call.1} parent=5 // pred_check
        _
      $region30: #{tpu_custom_call.1} parent=5 // pred_check_branch
        %156 = sbr.rel (%p153) target = $region32
      $region31: #{tpu_custom_call.1} parent=5 // pred_region
        %s157 = ssub.s32 %s13, 1
        // Predicated region
        $region33: #{tpu_custom_call.1} parent=31 // pred_check
          %p158 = pneg %p60
        $region34: #{tpu_custom_call.1} parent=31 // pred_check_branch
          %160 = sbr.rel (%p158) target = $region36
        $region35: #{tpu_custom_call.1} parent=31 // pred_region
          %162 = dma.done [#allocation3], 2560
        $region36: #{tpu_custom_call.1} parent=31 // pred_fallthru
          _
        %p163 = scmp.lt.s32.totalorder %s18, 1
        %s164 = scalar_select %p163, %s18, 1
        %s165 = smul.addr %s164, 3
        %s166 = smul.addr %s165, 8
        %s167 = scalar_lea.vmem %s0, %s166
        %p168 = pneg %p39
        %p169 = pneg %p36
        %p170 = pneg %p60
        %p171 = pneg %p57
        %p172 = pneg %p81
        %p173 = pneg %p78
        %p174 = pneg %p107
        %p175 = pneg %p104
        %s176 = sand.u32 %s94, 1
        %s177 = scalar_lea.sflag [#allocation4], %s176
        %s178 = sand.u32 %s94, 1
        %s179 = smul.addr %s178, 16
        %s180 = scalar_lea.vmem [#allocation5], %s179
        %p181 = scmp.lt.s32.totalorder %s18, 1
        %s182 = scalar_select %p181, %s18, 1
        %s183 = smul.addr %s182, 3
        %s184 = smul.addr %s183, 8
        %s185 = scalar_lea.vmem %s0, %s184
        %v186 = vld [vmem:[%s185] sm:$0xff]
        %v187 = vld [vmem:[%s185 + $0x8] sm:$0xff]
        %v188 = vld [vmem:[#allocation2] sm:$0xff]
        %v189 = vld [vmem:[#allocation2 + $0x8] sm:$0xff]
        %v190 = vld [vmem:[#allocation2 + $0x10] sm:$0xff]
        %v191 = vld [vmem:[#allocation2 + $0x18] sm:$0xff]
        %v192 = vld [vmem:[%s185 + $0x1] sm:$0xff]
        %v193 = vld [vmem:[%s185 + $0x9] sm:$0xff]
        %s194 = scalar_lea.vmem [#allocation2], 32
        %v195 = vld [vmem:[%s194] sm:$0xff]
        %v196 = vld [vmem:[%s194 + $0x8] sm:$0xff]
        %v197 = vld [vmem:[%s194 + $0x10] sm:$0xff]
        %v198 = vld [vmem:[%s194 + $0x18] sm:$0xff]
        %vm199 = vcmask 261120
        %v201 = vsel %vm199, %v192, 0
        %v204 = vsel %vm199, %v193, 0
        %206 = vmatpush.msra.mxu0 0.0
        %207 = vmatpush.msra.mxu0 0.0
        %208 = vmatpush.msra.mxu0 0.0
        %209 = vmatpush.msra.mxu0 0.0
        %210 = vmatpush.msra.mxu0 0.0
        %211 = vmatpush.msra.mxu0 0.0
        %212 = vmatpush.msra.mxu0 0.0
        %213 = vmatpush.msra.mxu0 0.0
        %214 = vmatpush.msra.mxu0 0.0
        %215 = vmatpush.msra.mxu0 0.0
        %216 = vmatpush.msra.mxu0 0.0
        %217 = vmatpush.msra.mxu0 0.0
        %218 = vmatpush.msra.mxu0 %v198
        %219 = vmatpush.msra.mxu0 %v197
        %220 = vmatpush.msra.mxu0 %v196
        %221 = vmatpush.msra.mxu0 %v195
        %222 = vmatmul.f32.gmra.mxu0 %v201
        %v223 = vpop.f32.mrf.mxu0
        %v224 = vadd.f32 0.0, %v223
        %225 = vmatmul.f32.gmra.mxu0 %v204
        %v226 = vpop.f32.mrf.mxu0
        %v227 = vadd.f32 0.0, %v226
        %228 = vdwg.mxu0
        %v230 = vsel %vm199, %v186, 0
        %v233 = vsel %vm199, %v187, 0
        %235 = vmatpush.msra.mxu0 0.0
        %236 = vmatpush.msra.mxu0 0.0
        %237 = vmatpush.msra.mxu0 0.0
        %238 = vmatpush.msra.mxu0 0.0
        %239 = vmatpush.msra.mxu0 0.0
        %240 = vmatpush.msra.mxu0 0.0
        %241 = vmatpush.msra.mxu0 0.0
        %242 = vmatpush.msra.mxu0 0.0
        %243 = vmatpush.msra.mxu0 0.0
        %244 = vmatpush.msra.mxu0 0.0
        %245 = vmatpush.msra.mxu0 0.0
        %246 = vmatpush.msra.mxu0 0.0
        %247 = vmatpush.msra.mxu0 %v191
        %248 = vmatpush.msra.mxu0 %v190
        %249 = vmatpush.msra.mxu0 %v189
        %250 = vmatpush.msra.mxu0 %v188
        %251 = vmatmul.f32.gmra.mxu0 %v230
        %v252 = vpop.f32.mrf.mxu0
        %v253 = vadd.f32 %v224, %v252
        %254 = vmatmul.f32.gmra.mxu0 %v233
        %v255 = vpop.f32.mrf.mxu0
        %v256 = vadd.f32 %v227, %v255
        %257 = vdwg.mxu0
        %v258 = vld [vmem:[%s185 + $0x2] sm:$0xff]
        %v259 = vld [vmem:[%s185 + $0xa] sm:$0xff]
        %s260 = scalar_lea.vmem [#allocation2], 64
        %v261 = vld [vmem:[%s260] sm:$0xff]
        %v262 = vld [vmem:[%s260 + $0x8] sm:$0xff]
        %v263 = vld [vmem:[%s260 + $0x10] sm:$0xff]
        %v264 = vld [vmem:[%s260 + $0x18] sm:$0xff]
        %v266 = vsel %vm199, %v258, 0
        %v269 = vsel %vm199, %v259, 0
        %271 = vmatpush.msra.mxu0 0.0
        %272 = vmatpush.msra.mxu0 0.0
        %273 = vmatpush.msra.mxu0 0.0
        %274 = vmatpush.msra.mxu0 0.0
        %275 = vmatpush.msra.mxu0 0.0
        %276 = vmatpush.msra.mxu0 0.0
        %277 = vmatpush.msra.mxu0 0.0
        %278 = vmatpush.msra.mxu0 0.0
        %279 = vmatpush.msra.mxu0 0.0
        %280 = vmatpush.msra.mxu0 0.0
        %281 = vmatpush.msra.mxu0 0.0
        %282 = vmatpush.msra.mxu0 0.0
        %283 = vmatpush.msra.mxu0 %v264
        %284 = vmatpush.msra.mxu0 %v263
        %285 = vmatpush.msra.mxu0 %v262
        %286 = vmatpush.msra.mxu0 %v261
        %287 = vmatmul.f32.gmra.mxu0 %v266
        %v288 = vpop.f32.mrf.mxu0
        %v289 = vadd.f32 0.0, %v288
        %290 = vmatmul.f32.gmra.mxu0 %v269
        %v291 = vpop.f32.mrf.mxu0
        %v292 = vadd.f32 0.0, %v291
        %293 = vdwg.mxu0
        %v294 = vadd.f32 %v253, %v289
        %v295 = vadd.f32 %v256, %v292
        %v296 = vld [vmem:[%s185 + $0x3] sm:$0xff]
        %v297 = vld [vmem:[%s185 + $0xb] sm:$0xff]
        %s298 = scalar_lea.vmem [#allocation2], 96
        %v299 = vld [vmem:[%s298] sm:$0xff]
        %v300 = vld [vmem:[%s298 + $0x8] sm:$0xff]
        %v301 = vld [vmem:[%s298 + $0x10] sm:$0xff]
        %v302 = vld [vmem:[%s298 + $0x18] sm:$0xff]
        %v304 = vsel %vm199, %v296, 0
        %v307 = vsel %vm199, %v297, 0
        %309 = vmatpush.msra.mxu0 0.0
        %310 = vmatpush.msra.mxu0 0.0
        %311 = vmatpush.msra.mxu0 0.0
        %312 = vmatpush.msra.mxu0 0.0
        %313 = vmatpush.msra.mxu0 0.0
        %314 = vmatpush.msra.mxu0 0.0
        %315 = vmatpush.msra.mxu0 0.0
        %316 = vmatpush.msra.mxu0 0.0
        %317 = vmatpush.msra.mxu0 0.0
        %318 = vmatpush.msra.mxu0 0.0
        %319 = vmatpush.msra.mxu0 0.0
        %320 = vmatpush.msra.mxu0 0.0
        %321 = vmatpush.msra.mxu0 %v302
        %322 = vmatpush.msra.mxu0 %v301
        %323 = vmatpush.msra.mxu0 %v300
        %324 = vmatpush.msra.mxu0 %v299
        %325 = vmatmul.f32.gmra.mxu0 %v304
        %v326 = vpop.f32.mrf.mxu0
        %v327 = vadd.f32 0.0, %v326
        %328 = vmatmul.f32.gmra.mxu0 %v307
        %v329 = vpop.f32.mrf.mxu0
        %v330 = vadd.f32 0.0, %v329
        %331 = vdwg.mxu0
        %v332 = vadd.f32 %v294, %v327
        %v333 = vadd.f32 %v295, %v330
        %v334 = vld [vmem:[%s185 + $0x4] sm:$0xff]
        %v335 = vld [vmem:[%s185 + $0xc] sm:$0xff]
        %s336 = scalar_lea.vmem [#allocation2], 128
        %v337 = vld [vmem:[%s336] sm:$0xff]
        %v338 = vld [vmem:[%s336 + $0x8] sm:$0xff]
        %v339 = vld [vmem:[%s336 + $0x10] sm:$0xff]
        %v340 = vld [vmem:[%s336 + $0x18] sm:$0xff]
        %v342 = vsel %vm199, %v334, 0
        %v345 = vsel %vm199, %v335, 0
        %347 = vmatpush.msra.mxu0 0.0
        %348 = vmatpush.msra.mxu0 0.0
        %349 = vmatpush.msra.mxu0 0.0
        %350 = vmatpush.msra.mxu0 0.0
        %351 = vmatpush.msra.mxu0 0.0
        %352 = vmatpush.msra.mxu0 0.0
        %353 = vmatpush.msra.mxu0 0.0
        %354 = vmatpush.msra.mxu0 0.0
        %355 = vmatpush.msra.mxu0 0.0
        %356 = vmatpush.msra.mxu0 0.0
        %357 = vmatpush.msra.mxu0 0.0
        %358 = vmatpush.msra.mxu0 0.0
        %359 = vmatpush.msra.mxu0 %v340
        %360 = vmatpush.msra.mxu0 %v339
        %361 = vmatpush.msra.mxu0 %v338
        %362 = vmatpush.msra.mxu0 %v337
        %363 = vmatmul.f32.gmra.mxu0 %v342
        %v364 = vpop.f32.mrf.mxu0
        %v365 = vadd.f32 0.0, %v364
        %366 = vmatmul.f32.gmra.mxu0 %v345
        %v367 = vpop.f32.mrf.mxu0
        %v368 = vadd.f32 0.0, %v367
        %369 = vdwg.mxu0
        %v370 = vadd.f32 %v332, %v365
        %v371 = vadd.f32 %v333, %v368
        %v372 = vld [vmem:[%s2] sm:$0x1]
        %v374 = vperm.slane %v372, 0
        %v376 = vadd.f32 %v370, %v374
        %v377 = vadd.f32 %v371, %v374
        %v378 = vmax.f32 %v376, 0.0
        %v379 = vmax.f32 %v377, 0.0
        %380 = vst [vmem:[%s180] sm:$0xff] %v378
        %381 = vst [vmem:[%s180 + $0x8] sm:$0xff] %v379
        %s382 = sand.u32 %s94, 1
        %s383 = scalar_lea.sflag [#allocation4], %s382
        %s384 = sand.u32 %s94, 1
        %s385 = smul.addr %s384, 16
        %s386 = scalar_lea.vmem [#allocation5], %s385
        // Predicated region
        $region37: #{tpu_custom_call.1} parent=31 // pred_check
          %p387 = pneg %p104
        $region38: #{tpu_custom_call.1} parent=31 // pred_check_branch
          %389 = sbr.rel (%p387) target = $region40
        $region39: #{tpu_custom_call.1} parent=31 // pred_region
          %391 = vsyncadd %s383, 0
          %s392 = smul.addr %s18, 2
          %s393 = smul.addr %s392, 8
          %s394 = scalar_lea.hbm %s3, %s393
          %s395 = sshll.u32 %s386, 4
          %s396 = int_to_ptr.vmem [resolvable:$true] %s395
          %s397 = sshll.u32 %s394, 4
          %s398 = int_to_ptr.hbm [resolvable:$true] %s397
          %403 = dma.vmem_to_hbm [thread:$0]  %s396, 256, %s398, %s383, 128, 128, 8
        $region40: #{tpu_custom_call.1} parent=31 // pred_fallthru
          _
      $region32: #{tpu_custom_call.1} parent=5 // pred_fallthru
        _
      %p404 = scmp.le.s32.totalorder 2, %s13
      // Predicated region
      $region41: #{tpu_custom_call.1} parent=5 // pred_check
        %p405 = pneg %p404
      $region42: #{tpu_custom_call.1} parent=5 // pred_check_branch
        %407 = sbr.rel (%p405) target = $region44
      $region43: #{tpu_custom_call.1} parent=5 // pred_region
        %s408 = ssub.s32 %s13, 2
        // Predicated region
        $region45: #{tpu_custom_call.1} parent=43 // pred_check
          %p409 = pneg %p110
        $region46: #{tpu_custom_call.1} parent=43 // pred_check_branch
          %411 = sbr.rel (%p409) target = $region48
        $region47: #{tpu_custom_call.1} parent=43 // pred_region
          %s412 = sand.u32 %s95, 1
          %s413 = scalar_lea.sflag [#allocation4], %s412
          %s414 = sand.u32 %s95, 1
          %s415 = smul.addr %s414, 16
          %s416 = scalar_lea.vmem [#allocation5], %s415
          %418 = dma.done %s413, 256
        $region48: #{tpu_custom_call.1} parent=43 // pred_fallthru
          _
      $region44: #{tpu_custom_call.1} parent=5 // pred_fallthru
        _
    $region6: #{tpu_custom_call.1} parent=1 // loop_footer
      %s17 = sadd.s32 1, %s13
    $region7: #{tpu_custom_call.1} parent=1 // loop_footer_branch
      %12 = sbr.rel target = $region3
    $region8: #{tpu_custom_call.1} parent=1 // loop_exit
      _
    %419 = vsyncpa [#allocation3], 1
    %s420 = scalar_lea.sflag [#allocation3], 1
    %421 = vsyncpa %s420, 1
    %422 = vsyncpa [#allocation4], 1
    %s423 = scalar_lea.sflag [#allocation4], 1
    %424 = vsyncpa %s423, 1

</llo_original>
